<compile_context>
chip_gen: v6e
topology: v6e:2x2x1
jax: 0.10.0
libtpu: 0.0.40
codegen_flags: <defaults>
</compile_context>

<pallas_src>
import jax
import jax.numpy as jnp
from jax import lax
from jax.experimental import pallas as pl
from jax.experimental.pallas import tpu as pltpu

H = 16           # spatial height of x.image
W = 16           # spatial width of x.image
HW = H * W       # flattened spatial size (lane axis inside the kernel)
C_HID = 32       # hidden channels of the synthetic recon module
K = 3            # 3x3 convs, padding=1 (SAME)
PADV = 128       # lane zero-padding on the flat axis (>= W+1; 128 keeps the concat aligned)


def _recon_kernel(x_ref, w1_ref, b1_ref, w2_ref, b2_ref, out_ref):
    """One image per grid step; everything stays in registers (no VMEM scratch).

    x_ref  : (1, 1, HW)      flattened image, lane-dense
    w1_ref : (9, C_HID, 1)   conv1 taps, [t] with t = dy*3 + dx
    b1_ref : (C_HID, 1)
    w2_ref : (9, C_HID)      conv2 taps, [t, :]
    b2_ref : (1, 1)          conv2 bias, SMEM scalar
    out_ref: (1, 1, HW)
    """
    x = x_ref[0]                       # (1, HW) f32
    w1 = w1_ref[...]                   # (9, C_HID, 1)  -- loaded once, taps sliced below
    b1 = b1_ref[...]                   # (C_HID, 1)
    w2 = w2_ref[...]                   # (9, C_HID)

    # Column masks: dx = +-1 taps must not read across a row boundary of the flattened
    # image.  Row (dy) boundaries are handled by the zero padding strips.
    col = lax.broadcasted_iota(jnp.int32, (1, HW), 1) % W
    m_left = col >= 1                  # valid when reading column col-1 (dx == 0)
    m_right = col <= W - 2             # valid when reading column col+1 (dx == 2)

    zpad1 = jnp.zeros((1, PADV), jnp.float32)
    xp = jnp.concatenate([zpad1, x, zpad1], axis=1)          # (1, HW + 2*PADV)

    # ---- conv1: 1 -> C_HID, 3x3 SAME.  Per-tap broadcast MAC on the VPU ----
    acc1 = jnp.zeros((C_HID, HW), jnp.float32)
    for dy in range(K):
        for dx in range(K):
            t = dy * K + dx
            s = PADV + (dy - 1) * W + (dx - 1)
            xs = xp[:, s:s + HW]                             # (1, HW) static lane shift
            if dx == 0:
                xs = jnp.where(m_left, xs, 0.0)
            elif dx == 2:
                xs = jnp.where(m_right, xs, 0.0)
            acc1 = acc1 + w1[t] * xs                         # (C_HID,1)*(1,HW)
    hidden = jnp.maximum(acc1 + b1, 0.0)                     # (C_HID, HW)

    # ---- conv2: C_HID -> 1, 3x3 SAME.  Channel reduction on the MXU ----
    z = jnp.dot(w2, hidden, preferred_element_type=jnp.float32)   # (9, HW)
    zpad9 = jnp.zeros((K * K, PADV), jnp.float32)
    zp = jnp.concatenate([zpad9, z, zpad9], axis=1)          # (9, HW + 2*PADV)

    y = jnp.zeros((1, HW), jnp.float32)
    for dy in range(K):
        for dx in range(K):
            t = dy * K + dx
            s = PADV + (dy - 1) * W + (dx - 1)
            row = zp[t:t + 1, s:s + HW]                      # (1, HW) shifted tap row
            if dx == 0:
                row = jnp.where(m_left, row, 0.0)
            elif dx == 2:
                row = jnp.where(m_right, row, 0.0)
            y = y + row

    # conv2 bias (SMEM scalar) + residual connection with the input image.
    out_ref[0] = y + b2_ref[0, 0] + x


@jax.jit
def _predict_step_batched(images, params):
    """Pallas-backed predict_step over a stack of images: (B, H, W) -> (B, H, W)."""
    w1, b1, w2, b2 = params
    b = images.shape[0]
    x_flat = images.astype(jnp.float32).reshape(b, 1, HW)    # lane-dense slabs

    out_flat = pl.pallas_call(
        _recon_kernel,
        out_shape=jax.ShapeDtypeStruct((b, 1, HW), jnp.float32),
        grid=(b,),
        in_specs=[
            pl.BlockSpec((1, 1, HW), lambda i: (i, 0, 0)),           # per-image slab
            pl.BlockSpec((K * K, C_HID, 1), lambda i: (0, 0, 0)),    # resident weights
            pl.BlockSpec((C_HID, 1), lambda i: (0, 0)),
            pl.BlockSpec((K * K, C_HID), lambda i: (0, 0)),
            pl.BlockSpec(memory_space=pltpu.MemorySpace.SMEM),       # b2 scalar
        ],
        out_specs=pl.BlockSpec((1, 1, HW), lambda i: (i, 0, 0)),
        compiler_params=pltpu.CompilerParams(
            dimension_semantics=("parallel",)),
    )(x_flat, w1, b1, w2, b2)
    return out_flat.reshape(b, H, W)


def motif_regularization_forward(image, params):
    """Mirrors MOTIF_Regularization.forward:
       recon_module.predict_step(x.image[None, None, ...]).squeeze((0, 1))"""
    x = image[None, None, ...]                       # lift to NCHW (1, 1, H, W)
    y = _predict_step_batched(x[:, 0], params)       # predict_step (N treated as batch)
    return y[0]                                      # squeeze (N, C)


def init_params():
    """Deterministic synthetic weights, already in kernel-ready layouts."""
    n1 = K * K * C_HID
    w1p = (jnp.sin(jnp.arange(n1, dtype=jnp.float32) * 0.37) * 0.2
           ).reshape(K * K, C_HID)
    b1 = jnp.cos(jnp.arange(C_HID, dtype=jnp.float32) * 0.11) * 0.05
    w2p = (jnp.sin(jnp.arange(n1, dtype=jnp.float32) * 0.23 + 1.0) * 0.1
           ).reshape(K * K, C_HID)
    b2 = jnp.full((1, 1), 0.01, jnp.float32)
    return (w1p.reshape(K * K, C_HID, 1),   # (9, C_HID, 1)  conv1, [t]
            b1.reshape(C_HID, 1),           # (C_HID, 1)
            w2p,                            # (9, C_HID)     conv2, [t, :]
            b2)                             # (1, 1)         SMEM scalar


def _reference_single(image, params):
    """Pure-JAX (XLA conv) reference of the same synthetic predict_step."""
    w1, b1, w2, b2 = params
    packed1 = w1.reshape(K * K, C_HID)                                  # [t, c]
    x = image[None, None, ...].astype(jnp.float32)                      # (1,1,H,W)
    W1 = jnp.transpose(packed1.reshape(K, K, 1, C_HID), (3, 2, 0, 1))   # OIHW (C,1,3,3)
    W2 = jnp.transpose(w2.reshape(K, K, 1, C_HID), (2, 3, 0, 1))        # OIHW (1,C,3,3)
    dn = ("NCHW", "OIHW", "NCHW")
    h = lax.conv_general_dilated(x, W1, (1, 1), "SAME", dimension_numbers=dn)
    h = jnp.maximum(h + b1.reshape(1, C_HID, 1, 1), 0.0)
    y = lax.conv_general_dilated(h, W2, (1, 1), "SAME", dimension_numbers=dn)
    y = y + b2.reshape(1, 1, 1, 1) + x
    return y[0, 0]


if __name__ == "__main__":
    key = jax.random.PRNGKey(0)
    B = 8   # stack of motion-phase images; the grid axis is parallel across TensorCores
    images = jax.random.normal(key, (B, H, W), dtype=jnp.float32)   # x.image stack
    params = init_params()

    # batched predict_step (primary, gridded path)
    out_b = jax.block_until_ready(_predict_step_batched(images, params))

    # single-image path == original module forward semantics
    out_1 = jax.block_until_ready(motif_regularization_forward(images[0], params))

    ref_b = jnp.stack([_reference_single(images[i], params) for i in range(B)])
    assert out_b.shape == (B, H, W), out_b.shape
    assert jnp.allclose(out_b, ref_b, atol=1e-4, rtol=1e-4), \
        float(jnp.max(jnp.abs(out_b - ref_b)))
    assert out_1.shape == (H, W), out_1.shape
    assert jnp.allclose(out_1, ref_b[0], atol=1e-4, rtol=1e-4), \
        float(jnp.max(jnp.abs(out_1 - ref_b[0])))

    print("KERNEL_OK")
</pallas_src>

<mosaic_0001>
module attributes {stable_mosaic.version = 11 : i64} {
  func.func @_recon_kernel(%arg0: i32, %arg1: memref<1x1x256xf32, #tpu.memory_space<vmem>>, %arg2: memref<9x32x1xf32, #tpu.memory_space<vmem>>, %arg3: memref<32x1xf32, #tpu.memory_space<vmem>>, %arg4: memref<9x32xf32, #tpu.memory_space<vmem>>, %arg5: memref<1x1xf32, #tpu.memory_space<smem>>, %arg6: memref<1x1x256xf32, #tpu.memory_space<vmem>>) attributes {dimension_semantics = [#tpu.dimension_semantics<parallel>], iteration_bounds = array<i64: 8>, scalar_prefetch = 0 : i64, scratch_operands = 0 : i64, tpu.core_type = #tpu.core_type<tc>, window_params = [{transform_indices = @transform_0, window_bounds = array<i64: 1, 1, 256>}, {pipeline_mode = #tpu.pipeline_mode<synchronous>, transform_indices = @transform_1, window_bounds = array<i64: 9, 32, 1>}, {pipeline_mode = #tpu.pipeline_mode<synchronous>, transform_indices = @transform_2, window_bounds = array<i64: 32, 1>}, {pipeline_mode = #tpu.pipeline_mode<synchronous>, transform_indices = @transform_3, window_bounds = array<i64: 9, 32>}, {transform_indices = @transform_4, window_bounds = array<i64: 1, 1>}, {transform_indices = @transform_5, window_bounds = array<i64: 1, 1, 256>}]} {
    %c0 = arith.constant 0 : index
    %c0_0 = arith.constant 0 : index
    %c0_1 = arith.constant 0 : index
    %0 = vector.load %arg1[%c0, %c0_0, %c0_1] : memref<1x1x256xf32, #tpu.memory_space<vmem>>, vector<1x1x256xf32>
    %1 = vector.shape_cast %0 : vector<1x1x256xf32> to vector<1x256xf32>
    %c0_2 = arith.constant 0 : index
    %c0_3 = arith.constant 0 : index
    %c0_4 = arith.constant 0 : index
    %2 = vector.load %arg2[%c0_2, %c0_3, %c0_4] : memref<9x32x1xf32, #tpu.memory_space<vmem>>, vector<9x32x1xf32>
    %c0_5 = arith.constant 0 : index
    %c0_6 = arith.constant 0 : index
    %3 = vector.load %arg3[%c0_5, %c0_6] : memref<32x1xf32, #tpu.memory_space<vmem>>, vector<32x1xf32>
    %c0_7 = arith.constant 0 : index
    %c0_8 = arith.constant 0 : index
    %4 = vector.load %arg4[%c0_7, %c0_8] : memref<9x32xf32, #tpu.memory_space<vmem>>, vector<9x32xf32>
    %5 = tpu.iota {dimensions = array<i32: 1>} : vector<1x256xi32>
    %c16_i32 = arith.constant 16 : i32
    %c0_i32 = arith.constant 0 : i32
    %6 = arith.cmpi eq, %c16_i32, %c0_i32 : i32
    %c1_i32 = arith.constant 1 : i32
    %7 = arith.select %6, %c1_i32, %c16_i32 : i32
    %8 = vector.broadcast %7 : i32 to vector<1x256xi32>
    %9 = arith.remsi %5, %8 : vector<1x256xi32>
    %c0_i32_9 = arith.constant 0 : i32
    %10 = vector.broadcast %c0_i32_9 : i32 to vector<1x256xi32>
    %11 = arith.cmpi ne, %9, %10 : vector<1x256xi32>
    %c0_i32_10 = arith.constant 0 : i32
    %12 = vector.broadcast %c0_i32_10 : i32 to vector<1x256xi32>
    %13 = arith.cmpi slt, %9, %12 : vector<1x256xi32>
    %c0_i32_11 = arith.constant 0 : i32
    %14 = arith.cmpi slt, %7, %c0_i32_11 : i32
    %15 = vector.broadcast %14 : i1 to vector<1x256xi1>
    %16 = vector.broadcast %15 : vector<1x256xi1> to vector<1x256xi1>
    %17 = arith.xori %13, %16 : vector<1x256xi1>
    %18 = arith.andi %17, %11 : vector<1x256xi1>
    %19 = vector.broadcast %7 : i32 to vector<1x256xi32>
    %20 = arith.addi %9, %19 : vector<1x256xi32>
    %21 = arith.select %18, %20, %9 : vector<1x256xi1>, vector<1x256xi32>
    %c1_i32_12 = arith.constant 1 : i32
    %22 = vector.broadcast %c1_i32_12 : i32 to vector<1x256xi32>
    %23 = arith.cmpi sge, %21, %22 : vector<1x256xi32>
    %c14_i32 = arith.constant 14 : i32
    %24 = vector.broadcast %c14_i32 : i32 to vector<1x256xi32>
    %25 = arith.cmpi sle, %21, %24 : vector<1x256xi32>
    %cst = arith.constant 0.000000e+00 : f32
    %26 = vector.broadcast %cst : f32 to vector<1x128xf32>
    %27 = tpu.concatenate %26, %1, %26 in 1 : vector<1x128xf32>, vector<1x256xf32>, vector<1x128xf32> -> vector<1x512xf32>
    %cst_13 = arith.constant 0.000000e+00 : f32
    %28 = vector.broadcast %cst_13 : f32 to vector<32x256xf32>
    %29 = vector.extract_strided_slice %27 {offsets = [0, 111], sizes = [1, 256], strides = [1, 1]} : vector<1x512xf32> to vector<1x256xf32>
    %cst_14 = arith.constant 0.000000e+00 : f32
    %30 = vector.broadcast %cst_14 : f32 to vector<1x256xf32>
    %31 = arith.select %23, %29, %30 : vector<1x256xi1>, vector<1x256xf32>
    %32 = vector.extract_strided_slice %2 {offsets = [0, 0, 0], sizes = [1, 32, 1], strides = [1, 1, 1]} : vector<9x32x1xf32> to vector<1x32x1xf32>
    %33 = vector.shape_cast %32 : vector<1x32x1xf32> to vector<32x1xf32>
    %34 = vector.broadcast %33 : vector<32x1xf32> to vector<32x256xf32>
    %35 = vector.broadcast %31 : vector<1x256xf32> to vector<32x256xf32>
    %36 = arith.mulf %34, %35 : vector<32x256xf32>
    %37 = arith.addf %28, %36 : vector<32x256xf32>
    %38 = vector.extract_strided_slice %27 {offsets = [0, 112], sizes = [1, 256], strides = [1, 1]} : vector<1x512xf32> to vector<1x256xf32>
    %39 = vector.extract_strided_slice %2 {offsets = [1, 0, 0], sizes = [1, 32, 1], strides = [1, 1, 1]} : vector<9x32x1xf32> to vector<1x32x1xf32>
    %40 = vector.shape_cast %39 : vector<1x32x1xf32> to vector<32x1xf32>
    %41 = vector.broadcast %40 : vector<32x1xf32> to vector<32x256xf32>
    %42 = vector.broadcast %38 : vector<1x256xf32> to vector<32x256xf32>
    %43 = arith.mulf %41, %42 : vector<32x256xf32>
    %44 = arith.addf %37, %43 : vector<32x256xf32>
    %45 = vector.extract_strided_slice %27 {offsets = [0, 113], sizes = [1, 256], strides = [1, 1]} : vector<1x512xf32> to vector<1x256xf32>
    %cst_15 = arith.constant 0.000000e+00 : f32
    %46 = vector.broadcast %cst_15 : f32 to vector<1x256xf32>
    %47 = arith.select %25, %45, %46 : vector<1x256xi1>, vector<1x256xf32>
    %48 = vector.extract_strided_slice %2 {offsets = [2, 0, 0], sizes = [1, 32, 1], strides = [1, 1, 1]} : vector<9x32x1xf32> to vector<1x32x1xf32>
    %49 = vector.shape_cast %48 : vector<1x32x1xf32> to vector<32x1xf32>
    %50 = vector.broadcast %49 : vector<32x1xf32> to vector<32x256xf32>
    %51 = vector.broadcast %47 : vector<1x256xf32> to vector<32x256xf32>
    %52 = arith.mulf %50, %51 : vector<32x256xf32>
    %53 = arith.addf %44, %52 : vector<32x256xf32>
    %54 = vector.extract_strided_slice %27 {offsets = [0, 127], sizes = [1, 256], strides = [1, 1]} : vector<1x512xf32> to vector<1x256xf32>
    %cst_16 = arith.constant 0.000000e+00 : f32
    %55 = vector.broadcast %cst_16 : f32 to vector<1x256xf32>
    %56 = arith.select %23, %54, %55 : vector<1x256xi1>, vector<1x256xf32>
    %57 = vector.extract_strided_slice %2 {offsets = [3, 0, 0], sizes = [1, 32, 1], strides = [1, 1, 1]} : vector<9x32x1xf32> to vector<1x32x1xf32>
    %58 = vector.shape_cast %57 : vector<1x32x1xf32> to vector<32x1xf32>
    %59 = vector.broadcast %58 : vector<32x1xf32> to vector<32x256xf32>
    %60 = vector.broadcast %56 : vector<1x256xf32> to vector<32x256xf32>
    %61 = arith.mulf %59, %60 : vector<32x256xf32>
    %62 = arith.addf %53, %61 : vector<32x256xf32>
    %63 = vector.extract_strided_slice %27 {offsets = [0, 128], sizes = [1, 256], strides = [1, 1]} : vector<1x512xf32> to vector<1x256xf32>
    %64 = vector.extract_strided_slice %2 {offsets = [4, 0, 0], sizes = [1, 32, 1], strides = [1, 1, 1]} : vector<9x32x1xf32> to vector<1x32x1xf32>
    %65 = vector.shape_cast %64 : vector<1x32x1xf32> to vector<32x1xf32>
    %66 = vector.broadcast %65 : vector<32x1xf32> to vector<32x256xf32>
    %67 = vector.broadcast %63 : vector<1x256xf32> to vector<32x256xf32>
    %68 = arith.mulf %66, %67 : vector<32x256xf32>
    %69 = arith.addf %62, %68 : vector<32x256xf32>
    %70 = vector.extract_strided_slice %27 {offsets = [0, 129], sizes = [1, 256], strides = [1, 1]} : vector<1x512xf32> to vector<1x256xf32>
    %cst_17 = arith.constant 0.000000e+00 : f32
    %71 = vector.broadcast %cst_17 : f32 to vector<1x256xf32>
    %72 = arith.select %25, %70, %71 : vector<1x256xi1>, vector<1x256xf32>
    %73 = vector.extract_strided_slice %2 {offsets = [5, 0, 0], sizes = [1, 32, 1], strides = [1, 1, 1]} : vector<9x32x1xf32> to vector<1x32x1xf32>
    %74 = vector.shape_cast %73 : vector<1x32x1xf32> to vector<32x1xf32>
    %75 = vector.broadcast %74 : vector<32x1xf32> to vector<32x256xf32>
    %76 = vector.broadcast %72 : vector<1x256xf32> to vector<32x256xf32>
    %77 = arith.mulf %75, %76 : vector<32x256xf32>
    %78 = arith.addf %69, %77 : vector<32x256xf32>
    %79 = vector.extract_strided_slice %27 {offsets = [0, 143], sizes = [1, 256], strides = [1, 1]} : vector<1x512xf32> to vector<1x256xf32>
    %cst_18 = arith.constant 0.000000e+00 : f32
    %80 = vector.broadcast %cst_18 : f32 to vector<1x256xf32>
    %81 = arith.select %23, %79, %80 : vector<1x256xi1>, vector<1x256xf32>
    %82 = vector.extract_strided_slice %2 {offsets = [6, 0, 0], sizes = [1, 32, 1], strides = [1, 1, 1]} : vector<9x32x1xf32> to vector<1x32x1xf32>
    %83 = vector.shape_cast %82 : vector<1x32x1xf32> to vector<32x1xf32>
    %84 = vector.broadcast %83 : vector<32x1xf32> to vector<32x256xf32>
    %85 = vector.broadcast %81 : vector<1x256xf32> to vector<32x256xf32>
    %86 = arith.mulf %84, %85 : vector<32x256xf32>
    %87 = arith.addf %78, %86 : vector<32x256xf32>
    %88 = vector.extract_strided_slice %27 {offsets = [0, 144], sizes = [1, 256], strides = [1, 1]} : vector<1x512xf32> to vector<1x256xf32>
    %89 = vector.extract_strided_slice %2 {offsets = [7, 0, 0], sizes = [1, 32, 1], strides = [1, 1, 1]} : vector<9x32x1xf32> to vector<1x32x1xf32>
    %90 = vector.shape_cast %89 : vector<1x32x1xf32> to vector<32x1xf32>
    %91 = vector.broadcast %90 : vector<32x1xf32> to vector<32x256xf32>
    %92 = vector.broadcast %88 : vector<1x256xf32> to vector<32x256xf32>
    %93 = arith.mulf %91, %92 : vector<32x256xf32>
    %94 = arith.addf %87, %93 : vector<32x256xf32>
    %95 = vector.extract_strided_slice %27 {offsets = [0, 145], sizes = [1, 256], strides = [1, 1]} : vector<1x512xf32> to vector<1x256xf32>
    %cst_19 = arith.constant 0.000000e+00 : f32
    %96 = vector.broadcast %cst_19 : f32 to vector<1x256xf32>
    %97 = arith.select %25, %95, %96 : vector<1x256xi1>, vector<1x256xf32>
    %98 = vector.extract_strided_slice %2 {offsets = [8, 0, 0], sizes = [1, 32, 1], strides = [1, 1, 1]} : vector<9x32x1xf32> to vector<1x32x1xf32>
    %99 = vector.shape_cast %98 : vector<1x32x1xf32> to vector<32x1xf32>
    %100 = vector.broadcast %99 : vector<32x1xf32> to vector<32x256xf32>
    %101 = vector.broadcast %97 : vector<1x256xf32> to vector<32x256xf32>
    %102 = arith.mulf %100, %101 : vector<32x256xf32>
    %103 = arith.addf %94, %102 : vector<32x256xf32>
    %104 = vector.broadcast %3 : vector<32x1xf32> to vector<32x256xf32>
    %105 = arith.addf %103, %104 : vector<32x256xf32>
    %cst_20 = arith.constant 0.000000e+00 : f32
    %106 = vector.broadcast %cst_20 : f32 to vector<32x256xf32>
    %107 = arith.maximumf %105, %106 : vector<32x256xf32>
    %cst_21 = arith.constant dense<0.000000e+00> : vector<9x256xf32>
    %108 = tpu.matmul %4, %107, %cst_21 {dimension_numbers = #tpu.dot_dimension_numbers<[1], [0], [0], [1], [0, 0, 1, 1], [], []>} : vector<9x32xf32>, vector<32x256xf32>, vector<9x256xf32> -> vector<9x256xf32>
    %cst_22 = arith.constant 0.000000e+00 : f32
    %109 = vector.broadcast %cst_22 : f32 to vector<9x128xf32>
    %110 = tpu.concatenate %109, %108, %109 in 1 : vector<9x128xf32>, vector<9x256xf32>, vector<9x128xf32> -> vector<9x512xf32>
    %cst_23 = arith.constant 0.000000e+00 : f32
    %111 = vector.broadcast %cst_23 : f32 to vector<1x256xf32>
    %112 = vector.extract_strided_slice %110 {offsets = [0, 111], sizes = [1, 256], strides = [1, 1]} : vector<9x512xf32> to vector<1x256xf32>
    %cst_24 = arith.constant 0.000000e+00 : f32
    %113 = vector.broadcast %cst_24 : f32 to vector<1x256xf32>
    %114 = arith.select %23, %112, %113 : vector<1x256xi1>, vector<1x256xf32>
    %115 = arith.addf %111, %114 : vector<1x256xf32>
    %116 = vector.extract_strided_slice %110 {offsets = [1, 112], sizes = [1, 256], strides = [1, 1]} : vector<9x512xf32> to vector<1x256xf32>
    %117 = arith.addf %115, %116 : vector<1x256xf32>
    %118 = vector.extract_strided_slice %110 {offsets = [2, 113], sizes = [1, 256], strides = [1, 1]} : vector<9x512xf32> to vector<1x256xf32>
    %cst_25 = arith.constant 0.000000e+00 : f32
    %119 = vector.broadcast %cst_25 : f32 to vector<1x256xf32>
    %120 = arith.select %25, %118, %119 : vector<1x256xi1>, vector<1x256xf32>
    %121 = arith.addf %117, %120 : vector<1x256xf32>
    %122 = vector.extract_strided_slice %110 {offsets = [3, 127], sizes = [1, 256], strides = [1, 1]} : vector<9x512xf32> to vector<1x256xf32>
    %cst_26 = arith.constant 0.000000e+00 : f32
    %123 = vector.broadcast %cst_26 : f32 to vector<1x256xf32>
    %124 = arith.select %23, %122, %123 : vector<1x256xi1>, vector<1x256xf32>
    %125 = arith.addf %121, %124 : vector<1x256xf32>
    %126 = vector.extract_strided_slice %110 {offsets = [4, 128], sizes = [1, 256], strides = [1, 1]} : vector<9x512xf32> to vector<1x256xf32>
    %127 = arith.addf %125, %126 : vector<1x256xf32>
    %128 = vector.extract_strided_slice %110 {offsets = [5, 129], sizes = [1, 256], strides = [1, 1]} : vector<9x512xf32> to vector<1x256xf32>
    %cst_27 = arith.constant 0.000000e+00 : f32
    %129 = vector.broadcast %cst_27 : f32 to vector<1x256xf32>
    %130 = arith.select %25, %128, %129 : vector<1x256xi1>, vector<1x256xf32>
    %131 = arith.addf %127, %130 : vector<1x256xf32>
    %132 = vector.extract_strided_slice %110 {offsets = [6, 143], sizes = [1, 256], strides = [1, 1]} : vector<9x512xf32> to vector<1x256xf32>
    %cst_28 = arith.constant 0.000000e+00 : f32
    %133 = vector.broadcast %cst_28 : f32 to vector<1x256xf32>
    %134 = arith.select %23, %132, %133 : vector<1x256xi1>, vector<1x256xf32>
    %135 = arith.addf %131, %134 : vector<1x256xf32>
    %136 = vector.extract_strided_slice %110 {offsets = [7, 144], sizes = [1, 256], strides = [1, 1]} : vector<9x512xf32> to vector<1x256xf32>
    %137 = arith.addf %135, %136 : vector<1x256xf32>
    %138 = vector.extract_strided_slice %110 {offsets = [8, 145], sizes = [1, 256], strides = [1, 1]} : vector<9x512xf32> to vector<1x256xf32>
    %cst_29 = arith.constant 0.000000e+00 : f32
    %139 = vector.broadcast %cst_29 : f32 to vector<1x256xf32>
    %140 = arith.select %25, %138, %139 : vector<1x256xi1>, vector<1x256xf32>
    %141 = arith.addf %137, %140 : vector<1x256xf32>
    %c0_30 = arith.constant 0 : index
    %c0_31 = arith.constant 0 : index
    %142 = memref.load %arg5[%c0_30, %c0_31] : memref<1x1xf32, #tpu.memory_space<smem>>
    %143 = vector.broadcast %142 : f32 to vector<1x256xf32>
    %144 = arith.addf %141, %143 : vector<1x256xf32>
    %145 = arith.addf %144, %1 : vector<1x256xf32>
    %c0_32 = arith.constant 0 : index
    %c0_33 = arith.constant 0 : index
    %c0_34 = arith.constant 0 : index
    %146 = vector.load %arg6[%c0_32, %c0_33, %c0_34] : memref<1x1x256xf32, #tpu.memory_space<vmem>>, vector<1x1x256xf32>
    %147 = vector.shape_cast %146 : vector<1x1x256xf32> to vector<1x256xf32>
    %148 = vector.shape_cast %145 : vector<1x256xf32> to vector<1x1x256xf32>
    tpu.vector_store %arg6[%c0_32, %c0_33, %c0_34], %148 {strides = array<i32>} : memref<1x1x256xf32, #tpu.memory_space<vmem>>, vector<1x1x256xf32>,
    return
  }
  func.func @transform_0(%arg0: i32) -> (i32, i32, i32) {
    %c0_i32 = arith.constant 0 : i32
    %c0_i32_0 = arith.constant 0 : i32
    %c0_i32_1 = arith.constant 0 : i32
    return %arg0, %c0_i32, %c0_i32_0 : i32, i32, i32
  }
  func.func @transform_1(%arg0: i32) -> (i32, i32, i32) {
    %c0_i32 = arith.constant 0 : i32
    %c0_i32_0 = arith.constant 0 : i32
    %c0_i32_1 = arith.constant 0 : i32
    %c0_i32_2 = arith.constant 0 : i32
    return %c0_i32, %c0_i32_0, %c0_i32_1 : i32, i32, i32
  }
  func.func @transform_2(%arg0: i32) -> (i32, i32) {
    %c0_i32 = arith.constant 0 : i32
    %c0_i32_0 = arith.constant 0 : i32
    %c0_i32_1 = arith.constant 0 : i32
    return %c0_i32, %c0_i32_0 : i32, i32
  }
  func.func @transform_3(%arg0: i32) -> (i32, i32) {
    %c0_i32 = arith.constant 0 : i32
    %c0_i32_0 = arith.constant 0 : i32
    %c0_i32_1 = arith.constant 0 : i32
    return %c0_i32, %c0_i32_0 : i32, i32
  }
  func.func @transform_4(%arg0: i32) -> (i32, i32) {
    %c0_i32 = arith.constant 0 : i32
    %c0_i32_0 = arith.constant 0 : i32
    %c0_i32_1 = arith.constant 0 : i32
    return %c0_i32, %c0_i32_0 : i32, i32
  }
  func.func @transform_5(%arg0: i32) -> (i32, i32, i32) {
    %c0_i32 = arith.constant 0 : i32
    %c0_i32_0 = arith.constant 0 : i32
    %c0_i32_1 = arith.constant 0 : i32
    return %arg0, %c0_i32, %c0_i32_0 : i32, i32, i32
  }
}

</mosaic_0001>

<llo_original>
// kernel: _predict_step_batched.1
$region0: #{_predict_step_batched.1}
  #allocation0 [shape = 'u32[]', space=smem, size = 0x4, offset = 0x4, fixed_abs, tag = 'smem constant byte address 0x4 - core index']
  #allocation1 [shape = 'u32[144,128]{1,0:T(1,128)}', space=vmem, size = 0x12000, scoped, tag = 'internal scratch']
  #allocation2 [shape = 'f32[1,1]{1,0:T(1,128)S(6)}', space=smem, size = 0x200, scoped, tag = 'scoped memory for _predict_step_batched.1']
  %s0 = inlined_call_operand.vmem [shape: f32[8,1,256], index: 0, kind: input, shape index: {}]
  %s1 = inlined_call_operand.vmem [shape: f32[9,32,1], index: 1, kind: input, shape index: {}]
  %s2 = inlined_call_operand.vmem [shape: f32[32,1], index: 2, kind: input, shape index: {}]
  %s3 = inlined_call_operand.vmem [shape: f32[9,32], index: 3, kind: input, shape index: {}]
  %s4 = inlined_call_operand.<no memory space> [shape: f32[1,1], index: 4, kind: input, shape index: {}]
  %s5 = inlined_call_operand.vmem [shape: f32[8,1,256], index: 5, kind: output, shape index: {}]
  %s6 = sld [smem:[#allocation0]]
  $region53: #{_predict_step_batched.1} parent=0
    _
  %s8 = ssub.s32 1, %s6
  %s9 = scalar_select 0, %s8, %s6
  %10 = sst [smem:[#allocation2]] %s4
  loop: start=0, step=1, limit=10
  $region2: #{_predict_step_batched.1} parent=0 // loop_pre_header
    _
  $region3: #{_predict_step_batched.1} parent=0 // loop_header
    %s12 = sphi 0, %s16
    %p13 = scmp.ge.s32.totalorder %s12, 10
    %s22 = sphi 0, %s24
    %s25 = sphi 0, %s22
    %s26 = sphi 0, %s25
    %s42 = sphi 0, %s26
    %s46 = sphi 0, %s46
    %s48 = sphi 0, %s46
    %s49 = sphi 0, %s48
    %s63 = sphi 0, %s49
    %s67 = sphi 0, %s67
    %s69 = sphi 0, %s67
    %s70 = sphi 0, %s69
    %s84 = sphi 0, %s70
    %s88 = sphi 0, %s88
    %s90 = sphi 0, %s88
    %s91 = sphi 0, %s90
    %s105 = sphi 0, %s91
    %s109 = sphi 0, %s109
    %s111 = sphi 0, %s109
    %s112 = sphi 0, %s111
    %s126 = sphi 0, %s112
    %s132 = sphi 0, %s134
    %s135 = sphi 0, %s132
    %s136 = sphi 0, %s135
    %s152 = sphi 0, %s136
  $region4: #{_predict_step_batched.1} parent=0 // loop_header_branch
    %15 = sbr.rel (%p13) target = $region8
  $region5: #{_predict_step_batched.1} parent=0 // loop_body
    %s17 = ssub.s32 %s12, 1
    %s18 = ssub.s32 %s12, 2
    %s19 = sadd.s32 %s12, 1
    %s20 = ssub.s32 %s12, %s19
    %p21 = scmp.eq.s32.totalorder %s20, 0
    %s23 = sadd.s32 %s22, 1
    %s24 = scalar_select %p21, %s22, %s23
    %p27 = pneg %p21
    %p28 = scmp.eq.s32.totalorder %s12, 7
    %p29 = por %p27, %p28
    %p30 = scmp.ne.s32.totalorder %s22, %s25
    %p31 = scmp.eq.s32.totalorder %s12, 0
    %p32 = por %p30, %p31
    %p33 = scmp.ne.s32.totalorder %s22, %s25
    %p34 = scmp.eq.s32.totalorder %s17, 7
    %p35 = por %p33, %p34
    %p36 = scmp.ne.s32.totalorder %s25, %s26
    %p37 = scmp.eq.s32.totalorder %s17, 0
    %p38 = por %p36, %p37
    %p39 = scmp.ne.s32.totalorder %s25, %s26
    %p40 = scmp.eq.s32.totalorder %s18, 7
    %p41 = por %p39, %p40
    %p43 = scmp.ne.s32.totalorder %s26, %s42
    %p44 = scmp.eq.s32.totalorder %s18, 0
    %p45 = por %p43, %p44
    %s47 = sadd.s32 %s46, 1
    %p50 = scmp.eq.s32.totalorder %s12, 7
    %p51 = scmp.ne.s32.totalorder %s46, %s48
    %p52 = scmp.eq.s32.totalorder %s12, 0
    %p53 = por %p51, %p52
    %p54 = scmp.ne.s32.totalorder %s46, %s48
    %p55 = scmp.eq.s32.totalorder %s17, 7
    %p56 = por %p54, %p55
    %p57 = scmp.ne.s32.totalorder %s48, %s49
    %p58 = scmp.eq.s32.totalorder %s17, 0
    %p59 = por %p57, %p58
    %p60 = scmp.ne.s32.totalorder %s48, %s49
    %p61 = scmp.eq.s32.totalorder %s18, 7
    %p62 = por %p60, %p61
    %p64 = scmp.ne.s32.totalorder %s49, %s63
    %p65 = scmp.eq.s32.totalorder %s18, 0
    %p66 = por %p64, %p65
    %s68 = sadd.s32 %s67, 1
    %p71 = scmp.eq.s32.totalorder %s12, 7
    %p72 = scmp.ne.s32.totalorder %s67, %s69
    %p73 = scmp.eq.s32.totalorder %s12, 0
    %p74 = por %p72, %p73
    %p75 = scmp.ne.s32.totalorder %s67, %s69
    %p76 = scmp.eq.s32.totalorder %s17, 7
    %p77 = por %p75, %p76
    %p78 = scmp.ne.s32.totalorder %s69, %s70
    %p79 = scmp.eq.s32.totalorder %s17, 0
    %p80 = por %p78, %p79
    %p81 = scmp.ne.s32.totalorder %s69, %s70
    %p82 = scmp.eq.s32.totalorder %s18, 7
    %p83 = por %p81, %p82
    %p85 = scmp.ne.s32.totalorder %s70, %s84
    %p86 = scmp.eq.s32.totalorder %s18, 0
    %p87 = por %p85, %p86
    %s89 = sadd.s32 %s88, 1
    %p92 = scmp.eq.s32.totalorder %s12, 7
    %p93 = scmp.ne.s32.totalorder %s88, %s90
    %p94 = scmp.eq.s32.totalorder %s12, 0
    %p95 = por %p93, %p94
    %p96 = scmp.ne.s32.totalorder %s88, %s90
    %p97 = scmp.eq.s32.totalorder %s17, 7
    %p98 = por %p96, %p97
    %p99 = scmp.ne.s32.totalorder %s90, %s91
    %p100 = scmp.eq.s32.totalorder %s17, 0
    %p101 = por %p99, %p100
    %p102 = scmp.ne.s32.totalorder %s90, %s91
    %p103 = scmp.eq.s32.totalorder %s18, 7
    %p104 = por %p102, %p103
    %p106 = scmp.ne.s32.totalorder %s91, %s105
    %p107 = scmp.eq.s32.totalorder %s18, 0
    %p108 = por %p106, %p107
    %s110 = sadd.s32 %s109, 1
    %p113 = scmp.eq.s32.totalorder %s12, 7
    %p114 = scmp.ne.s32.totalorder %s109, %s111
    %p115 = scmp.eq.s32.totalorder %s12, 0
    %p116 = por %p114, %p115
    %p117 = scmp.ne.s32.totalorder %s109, %s111
    %p118 = scmp.eq.s32.totalorder %s17, 7
    %p119 = por %p117, %p118
    %p120 = scmp.ne.s32.totalorder %s111, %s112
    %p121 = scmp.eq.s32.totalorder %s17, 0
    %p122 = por %p120, %p121
    %p123 = scmp.ne.s32.totalorder %s111, %s112
    %p124 = scmp.eq.s32.totalorder %s18, 7
    %p125 = por %p123, %p124
    %p127 = scmp.ne.s32.totalorder %s112, %s126
    %p128 = scmp.eq.s32.totalorder %s18, 0
    %p129 = por %p127, %p128
    %s130 = ssub.s32 %s12, %s19
    %p131 = scmp.eq.s32.totalorder %s130, 0
    %s133 = sadd.s32 %s132, 1
    %s134 = scalar_select %p131, %s132, %s133
    %p137 = pneg %p131
    %p138 = scmp.eq.s32.totalorder %s12, 7
    %p139 = por %p137, %p138
    %p140 = scmp.ne.s32.totalorder %s132, %s135
    %p141 = scmp.eq.s32.totalorder %s12, 0
    %p142 = por %p140, %p141
    %p143 = scmp.ne.s32.totalorder %s132, %s135
    %p144 = scmp.eq.s32.totalorder %s17, 7
    %p145 = por %p143, %p144
    %p146 = scmp.ne.s32.totalorder %s135, %s136
    %p147 = scmp.eq.s32.totalorder %s17, 0
    %p148 = por %p146, %p147
    %p149 = scmp.ne.s32.totalorder %s135, %s136
    %p150 = scmp.eq.s32.totalorder %s18, 7
    %p151 = por %p149, %p150
    %p153 = scmp.ne.s32.totalorder %s136, %s152
    %p154 = scmp.eq.s32.totalorder %s18, 0
    %p155 = por %p153, %p154
    %p156 = scmp.le.s32.totalorder 1, %s12
    %p157 = scmp.lt.s32.totalorder %s12, 9
    %p158 = pnand %p156, %p157
    %p159 = pneg %p158
    // Predicated region
    $region9: #{_predict_step_batched.1} parent=5 // pred_check
      _
    $region10: #{_predict_step_batched.1} parent=5 // pred_check_branch
      %161 = sbr.rel (%p158) target = $region12
    $region11: #{_predict_step_batched.1} parent=5 // pred_region
      %s162 = ssub.s32 %s12, 1
      // Predicated region
      $region13: #{_predict_step_batched.1} parent=11 // pred_check
        %p163 = pneg %p59
      $region14: #{_predict_step_batched.1} parent=11 // pred_check_branch
        %165 = sbr.rel (%p163) target = $region16
      $region15: #{_predict_step_batched.1} parent=11 // pred_region
        _
      $region16: #{_predict_step_batched.1} parent=11 // pred_fallthru
        _
      // Predicated region
      $region17: #{_predict_step_batched.1} parent=11 // pred_check
        %p166 = pneg %p80
      $region18: #{_predict_step_batched.1} parent=11 // pred_check_branch
        %168 = sbr.rel (%p166) target = $region20
      $region19: #{_predict_step_batched.1} parent=11 // pred_region
        _
      $region20: #{_predict_step_batched.1} parent=11 // pred_fallthru
        _
      // Predicated region
      $region21: #{_predict_step_batched.1} parent=11 // pred_check
        %p169 = pneg %p101
      $region22: #{_predict_step_batched.1} parent=11 // pred_check_branch
        %171 = sbr.rel (%p169) target = $region24
      $region23: #{_predict_step_batched.1} parent=11 // pred_region
        _
      $region24: #{_predict_step_batched.1} parent=11 // pred_fallthru
        _
      // Predicated region
      $region25: #{_predict_step_batched.1} parent=11 // pred_check
        %p172 = pneg %p122
      $region26: #{_predict_step_batched.1} parent=11 // pred_check_branch
        %174 = sbr.rel (%p172) target = $region28
      $region27: #{_predict_step_batched.1} parent=11 // pred_region
        _
      $region28: #{_predict_step_batched.1} parent=11 // pred_fallthru
        _
    $region12: #{_predict_step_batched.1} parent=5 // pred_fallthru
      _
    %p175 = scmp.lt.s32.totalorder %s12, 8
    // Predicated region
    $region29: #{_predict_step_batched.1} parent=5 // pred_check
      %p176 = pneg %p175
    $region30: #{_predict_step_batched.1} parent=5 // pred_check_branch
      %178 = sbr.rel (%p176) target = $region32
    $region31: #{_predict_step_batched.1} parent=5 // pred_region
      // Predicated region
      $region33: #{_predict_step_batched.1} parent=31 // pred_check
        %p179 = pneg %p32
      $region34: #{_predict_step_batched.1} parent=31 // pred_check_branch
        %181 = sbr.rel (%p179) target = $region36
      $region35: #{_predict_step_batched.1} parent=31 // pred_region
        %p182 = scmp.lt.s32.totalorder %s12, 7
        %s183 = scalar_select %p182, %s12, 7
        %s184 = smul.addr %s183, 2
        %s185 = scalar_lea.vmem %s0, %s184
      $region36: #{_predict_step_batched.1} parent=31 // pred_fallthru
        _
    $region32: #{_predict_step_batched.1} parent=5 // pred_fallthru
      _
    %p186 = scmp.le.s32.totalorder 1, %s12
    %p187 = scmp.lt.s32.totalorder %s12, 9
    %p188 = pnand %p186, %p187
    %p189 = pneg %p188
    // Predicated region
    $region37: #{_predict_step_batched.1} parent=5 // pred_check
      _
    $region38: #{_predict_step_batched.1} parent=5 // pred_check_branch
      %191 = sbr.rel (%p188) target = $region40
    $region39: #{_predict_step_batched.1} parent=5 // pred_region
      %s192 = ssub.s32 %s12, 1
      %p193 = scmp.lt.s32.totalorder %s17, 7
      %s194 = scalar_select %p193, %s17, 7
      %s195 = smul.addr %s194, 2
      %s196 = scalar_lea.vmem %s0, %s195
      %p197 = pneg %p38
      %p198 = pneg %p35
      %p199 = pneg %p59
      %p200 = pneg %p56
      %p201 = pneg %p80
      %p202 = pneg %p77
      %p203 = pneg %p101
      %p204 = pneg %p98
      %p205 = pneg %p122
      %p206 = pneg %p119
      %p207 = pneg %p148
      %p208 = pneg %p145
      %p209 = scmp.lt.s32.totalorder %s17, 7
      %s210 = scalar_select %p209, %s17, 7
      %s211 = smul.addr %s210, 2
      %s212 = scalar_lea.vmem %s5, %s211
      %p213 = scmp.lt.s32.totalorder %s17, 7
      %s214 = scalar_select %p213, %s17, 7
      %s215 = smul.addr %s214, 2
      %s216 = scalar_lea.vmem %s0, %s215
      %p217 = scmp.lt.s32.totalorder %s17, 7
      %s218 = scalar_select %p217, %s17, 7
      %s219 = smul.addr %s218, 2
      %s220 = scalar_lea.vmem %s5, %s219
      %v221 = vld [vmem:[%s216] sm:$0x3]
      %v222 = vld [vmem:[%s1] sm:$0xff]
      %v223 = vld [vmem:[%s1 + $0x8] sm:$0xff]
      %v224 = vld [vmem:[%s1 + $0x10] sm:$0xff]
      %v225 = vld [vmem:[%s1 + $0x18] sm:$0xff]
      %v226 = vld [vmem:[%s1 + $0x20] sm:$0xff]
      %v227 = vld [vmem:[%s1 + $0x28] sm:$0xff]
      %v228 = vld [vmem:[%s1 + $0x30] sm:$0xff]
      %v229 = vld [vmem:[%s1 + $0x38] sm:$0xff]
      %v230 = vld [vmem:[%s1 + $0x40] sm:$0xff]
      %v231 = vld [vmem:[%s1 + $0x48] sm:$0xff]
      %v232 = vld [vmem:[%s1 + $0x50] sm:$0xff]
      %v233 = vld [vmem:[%s1 + $0x58] sm:$0xff]
      %v234 = vld [vmem:[%s1 + $0x60] sm:$0xff]
      %v235 = vld [vmem:[%s1 + $0x68] sm:$0xff]
      %v236 = vld [vmem:[%s1 + $0x70] sm:$0xff]
      %v237 = vld [vmem:[%s1 + $0x78] sm:$0xff]
      %v238 = vld [vmem:[%s1 + $0x80] sm:$0xff]
      %v239 = vld [vmem:[%s1 + $0x88] sm:$0xff]
      %v240 = vld [vmem:[%s1 + $0x90] sm:$0xff]
      %v241 = vld [vmem:[%s1 + $0x98] sm:$0xff]
      %v242 = vld [vmem:[%s1 + $0xa0] sm:$0xff]
      %v243 = vld [vmem:[%s1 + $0xa8] sm:$0xff]
      %v244 = vld [vmem:[%s1 + $0xb0] sm:$0xff]
      %v245 = vld [vmem:[%s1 + $0xb8] sm:$0xff]
      %v246 = vld [vmem:[%s1 + $0xc0] sm:$0xff]
      %v247 = vld [vmem:[%s1 + $0xc8] sm:$0xff]
      %v248 = vld [vmem:[%s1 + $0xd0] sm:$0xff]
      %v249 = vld [vmem:[%s1 + $0xd8] sm:$0xff]
      %v250 = vld [vmem:[%s1 + $0xe0] sm:$0xff]
      %v251 = vld [vmem:[%s1 + $0xe8] sm:$0xff]
      %v252 = vld [vmem:[%s1 + $0xf0] sm:$0xff]
      %v253 = vld [vmem:[%s1 + $0xf8] sm:$0xff]
      %v254 = vld [vmem:[%s1 + $0x100] sm:$0xff]
      %v255 = vld [vmem:[%s1 + $0x108] sm:$0xff]
      %v256 = vld [vmem:[%s1 + $0x110] sm:$0xff]
      %v257 = vld [vmem:[%s1 + $0x118] sm:$0xff]
      %v258 = vld [vmem:[%s2] sm:$0xff]
      %v259 = vld [vmem:[%s2 + $0x8] sm:$0xff]
      %v260 = vld [vmem:[%s2 + $0x10] sm:$0xff]
      %v261 = vld [vmem:[%s2 + $0x18] sm:$0xff]
      %v262 = vld [vmem:[%s3] sm:$0xff]
      %v263 = vld [vmem:[%s3 + $0x8] sm:$0x1]
      %v264 = vlaneseq
      %v265 = vand.u32 %v264, 127
      %v266 = vadd.s32 %v265, 128
      %vm267 = vcmp.lt.s32.totalorder %v265, 0
      %v268 = vsub.s32 0, %v265
      %v269 = vsel %vm267, %v268, %v265
      %v270 = vshrl.u32 %v269, 4
      %v271 = vand.u32 %v269, 15
      %v272 = vsub.s32 0, %v271
      %v273 = vsel %vm267, %v272, %v271
      %vm274 = vcmp.lt.s32.totalorder %v266, 0
      %v275 = vsub.s32 0, %v266
      %v276 = vsel %vm274, %v275, %v266
      %v277 = vshrl.u32 %v276, 4
      %v278 = vand.u32 %v276, 15
      %v279 = vsub.s32 0, %v278
      %v280 = vsel %vm274, %v279, %v278
      %vm281 = vcmp.ne.s32.totalorder %v273, 0
      %vm282 = vcmp.ne.s32.totalorder %v280, 0
      %vm283 = vcmp.lt.s32.totalorder %v273, 0
      %vm284 = vcmp.lt.s32.totalorder %v280, 0
      %vm285 = vmand %vm283, %vm281
      %vm286 = vmand %vm284, %vm282
      %v287 = vadd.s32 %v273, 16
      %v288 = vadd.s32 %v280, 16
      %v289 = vsel %vm285, %v287, %v273
      %v290 = vsel %vm286, %v288, %v280
      %vm291 = vcmp.ge.s32.totalorder %v289, 1
      %vm292 = vcmp.ge.s32.totalorder %v290, 1
      %vm293 = vcmp.le.s32.totalorder %v289, 14
      %vm294 = vcmp.le.s32.totalorder %v290, 14
      %v296 = vlaneseq
      %v297 = vshrl.u32 %v296, 7
      %v298 = vsub.s32 0, %v297
      %v299 = vrot.slane %v221, %v298
      %v300 = vlaneseq
      %v301 = vshrl.u32 %v300, 7
      %v302 = vsub.s32 1, %v301
      %v303 = vrot.slane %v221, %v302
      %307 = vrot.lane.b32.xlu0 0.0, 17
      %v308 = vpop.permute.xlu0 %307
      %309 = vrot.lane.b32.xlu0 %v299, 17
      %v310 = vpop.permute.xlu0 %309
      %311 = vrot.lane.b32.xlu0 %v303, 17
      %v312 = vpop.permute.xlu0 %311
      %vm313 = vcmask 138240
      %v314 = vsel %vm313, %v308, %v310
      %v315 = vsel %vm313, %v310, %v312
      %v318 = vsel %vm291, %v314, 0.0
      %v319 = vsel %vm292, %v315, 0.0
      %321 = vset.pattern.permute.xlu0 0
      %322 = vperm.xlu0 %321, %v222
      %v323 = vpop.permute.xlu0 %322
      %326 = vset.pattern.permute.xlu0 0
      %327 = vperm.xlu0 %326, %v223
      %v328 = vpop.permute.xlu0 %327
      %331 = vset.pattern.permute.xlu0 0
      %332 = vperm.xlu0 %331, %v224
      %v333 = vpop.permute.xlu0 %332
      %336 = vset.pattern.permute.xlu0 0
      %337 = vperm.xlu0 %336, %v225
      %v338 = vpop.permute.xlu0 %337
      %v340 = vlaneseq
      %v341 = vshrl.u32 %v340, 7
      %v342 = vsub.s32 0, %v341
      %v343 = vrot.slane %v318, %v342
      %v344 = vlaneseq
      %v345 = vshrl.u32 %v344, 7
      %v346 = vsub.s32 0, %v345
      %v347 = vrot.slane %v319, %v346
      %v348 = vmul.f32 %v323, %v343
      %v349 = vmul.f32 %v323, %v347
      %v350 = vmul.f32 %v328, %v343
      %v351 = vmul.f32 %v328, %v347
      %v352 = vmul.f32 %v333, %v343
      %v353 = vmul.f32 %v333, %v347
      %v354 = vmul.f32 %v338, %v343
      %v355 = vmul.f32 %v338, %v347
      %v356 = vadd.f32 %v348, 0.0
      %v357 = vadd.f32 %v349, 0.0
      %v358 = vadd.f32 %v350, 0.0
      %v359 = vadd.f32 %v351, 0.0
      %v360 = vadd.f32 %v352, 0.0
      %v361 = vadd.f32 %v353, 0.0
      %v362 = vadd.f32 %v354, 0.0
      %v363 = vadd.f32 %v355, 0.0
      %365 = vset.pattern.permute.xlu0 0
      %366 = vperm.xlu0 %365, %v226
      %v367 = vpop.permute.xlu0 %366
      %370 = vset.pattern.permute.xlu0 0
      %371 = vperm.xlu0 %370, %v227
      %v372 = vpop.permute.xlu0 %371
      %375 = vset.pattern.permute.xlu0 0
      %376 = vperm.xlu0 %375, %v228
      %v377 = vpop.permute.xlu0 %376
      %380 = vset.pattern.permute.xlu0 0
      %381 = vperm.xlu0 %380, %v229
      %v382 = vpop.permute.xlu0 %381
      %v384 = vlaneseq
      %v385 = vshrl.u32 %v384, 7
      %v386 = vsub.s32 0, %v385
      %v387 = vlaneseq
      %v388 = vshrl.u32 %v387, 7
      %v389 = vsub.s32 0, %v388
      %v390 = vrot.slane %v299, %v389
      %v391 = vlaneseq
      %v392 = vshrl.u32 %v391, 7
      %v393 = vsub.s32 0, %v392
      %v394 = vrot.slane %v303, %v393
      %v395 = vmul.f32 %v367, 0.0
      %v396 = vmul.f32 %v367, %v390
      %v397 = vmul.f32 %v367, %v394
      %v398 = vmul.f32 %v372, 0.0
      %v399 = vmul.f32 %v372, %v390
      %v400 = vmul.f32 %v372, %v394
      %v401 = vmul.f32 %v377, 0.0
      %v402 = vmul.f32 %v377, %v390
      %v403 = vmul.f32 %v377, %v394
      %v404 = vmul.f32 %v382, 0.0
      %v405 = vmul.f32 %v382, %v390
      %v406 = vmul.f32 %v382, %v394
      %419 = vrot.lane.b32.xlu0 %v395, 16
      %v420 = vpop.permute.xlu0 %419
      %421 = vrot.lane.b32.xlu0 %v396, 16
      %v422 = vpop.permute.xlu0 %421
      %423 = vrot.lane.b32.xlu0 %v397, 16
      %v424 = vpop.permute.xlu0 %423
      %425 = vrot.lane.b32.xlu0 %v398, 16
      %v426 = vpop.permute.xlu0 %425
      %427 = vrot.lane.b32.xlu0 %v399, 16
      %v428 = vpop.permute.xlu0 %427
      %429 = vrot.lane.b32.xlu0 %v400, 16
      %v430 = vpop.permute.xlu0 %429
      %431 = vrot.lane.b32.xlu0 %v401, 16
      %v432 = vpop.permute.xlu0 %431
      %433 = vrot.lane.b32.xlu0 %v402, 16
      %v434 = vpop.permute.xlu0 %433
      %435 = vrot.lane.b32.xlu0 %v403, 16
      %v436 = vpop.permute.xlu0 %435
      %437 = vrot.lane.b32.xlu0 %v404, 16
      %v438 = vpop.permute.xlu0 %437
      %439 = vrot.lane.b32.xlu0 %v405, 16
      %v440 = vpop.permute.xlu0 %439
      %441 = vrot.lane.b32.xlu0 %v406, 16
      %v442 = vpop.permute.xlu0 %441
      %vm443 = vcmask 130048
      %v444 = vsel %vm443, %v420, %v422
      %v445 = vsel %vm443, %v422, %v424
      %v446 = vsel %vm443, %v426, %v428
      %v447 = vsel %vm443, %v428, %v430
      %v448 = vsel %vm443, %v432, %v434
      %v449 = vsel %vm443, %v434, %v436
      %v450 = vsel %vm443, %v438, %v440
      %v451 = vsel %vm443, %v440, %v442
      %v460 = vadd.f32 %v356, %v444
      %v461 = vadd.f32 %v357, %v445
      %v462 = vadd.f32 %v358, %v446
      %v463 = vadd.f32 %v359, %v447
      %v464 = vadd.f32 %v360, %v448
      %v465 = vadd.f32 %v361, %v449
      %v466 = vadd.f32 %v362, %v450
      %v467 = vadd.f32 %v363, %v451
      %468 = vrot.lane.b32.xlu0 0.0, 15
      %v469 = vpop.permute.xlu0 %468
      %470 = vrot.lane.b32.xlu0 %v299, 15
      %v471 = vpop.permute.xlu0 %470
      %472 = vrot.lane.b32.xlu0 %v303, 15
      %v473 = vpop.permute.xlu0 %472
      %vm474 = vcmask 121856
      %v475 = vsel %vm474, %v469, %v471
      %v476 = vsel %vm474, %v471, %v473
      %v479 = vsel %vm293, %v475, 0.0
      %v480 = vsel %vm294, %v476, 0.0
      %482 = vset.pattern.permute.xlu0 0
      %483 = vperm.xlu0 %482, %v230
      %v484 = vpop.permute.xlu0 %483
      %487 = vset.pattern.permute.xlu0 0
      %488 = vperm.xlu0 %487, %v231
      %v489 = vpop.permute.xlu0 %488
      %492 = vset.pattern.permute.xlu0 0
      %493 = vperm.xlu0 %492, %v232
      %v494 = vpop.permute.xlu0 %493
      %497 = vset.pattern.permute.xlu0 0
      %498 = vperm.xlu0 %497, %v233
      %v499 = vpop.permute.xlu0 %498
      %v501 = vlaneseq
      %v502 = vshrl.u32 %v501, 7
      %v503 = vsub.s32 0, %v502
      %v504 = vrot.slane %v479, %v503
      %v505 = vlaneseq
      %v506 = vshrl.u32 %v505, 7
      %v507 = vsub.s32 0, %v506
      %v508 = vrot.slane %v480, %v507
      %v509 = vmul.f32 %v484, %v504
      %v510 = vmul.f32 %v484, %v508
      %v511 = vmul.f32 %v489, %v504
      %v512 = vmul.f32 %v489, %v508
      %v513 = vmul.f32 %v494, %v504
      %v514 = vmul.f32 %v494, %v508
      %v515 = vmul.f32 %v499, %v504
      %v516 = vmul.f32 %v499, %v508
      %v517 = vadd.f32 %v460, %v509
      %v518 = vadd.f32 %v461, %v510
      %v519 = vadd.f32 %v462, %v511
      %v520 = vadd.f32 %v463, %v512
      %v521 = vadd.f32 %v464, %v513
      %v522 = vadd.f32 %v465, %v514
      %v523 = vadd.f32 %v466, %v515
      %v524 = vadd.f32 %v467, %v516
      %525 = vrot.lane.b32.xlu0 0.0, 1
      %v526 = vpop.permute.xlu0 %525
      %527 = vrot.lane.b32.xlu0 %v299, 1
      %v528 = vpop.permute.xlu0 %527
      %529 = vrot.lane.b32.xlu0 %v303, 1
      %v530 = vpop.permute.xlu0 %529
      %vm531 = vcmask 7168
      %v532 = vsel %vm531, %v526, %v528
      %v533 = vsel %vm531, %v528, %v530
      %v536 = vsel %vm291, %v532, 0.0
      %v537 = vsel %vm292, %v533, 0.0
      %539 = vset.pattern.permute.xlu0 0
      %540 = vperm.xlu0 %539, %v234
      %v541 = vpop.permute.xlu0 %540
      %544 = vset.pattern.permute.xlu0 0
      %545 = vperm.xlu0 %544, %v235
      %v546 = vpop.permute.xlu0 %545
      %549 = vset.pattern.permute.xlu0 0
      %550 = vperm.xlu0 %549, %v236
      %v551 = vpop.permute.xlu0 %550
      %554 = vset.pattern.permute.xlu0 0
      %555 = vperm.xlu0 %554, %v237
      %v556 = vpop.permute.xlu0 %555
      %v558 = vlaneseq
      %v559 = vshrl.u32 %v558, 7
      %v560 = vsub.s32 0, %v559
      %v561 = vrot.slane %v536, %v560
      %v562 = vlaneseq
      %v563 = vshrl.u32 %v562, 7
      %v564 = vsub.s32 0, %v563
      %v565 = vrot.slane %v537, %v564
      %v566 = vmul.f32 %v541, %v561
      %v567 = vmul.f32 %v541, %v565
      %v568 = vmul.f32 %v546, %v561
      %v569 = vmul.f32 %v546, %v565
      %v570 = vmul.f32 %v551, %v561
      %v571 = vmul.f32 %v551, %v565
      %v572 = vmul.f32 %v556, %v561
      %v573 = vmul.f32 %v556, %v565
      %v574 = vadd.f32 %v517, %v566
      %v575 = vadd.f32 %v518, %v567
      %v576 = vadd.f32 %v519, %v568
      %v577 = vadd.f32 %v520, %v569
      %v578 = vadd.f32 %v521, %v570
      %v579 = vadd.f32 %v522, %v571
      %v580 = vadd.f32 %v523, %v572
      %v581 = vadd.f32 %v524, %v573
      %583 = vset.pattern.permute.xlu0 0
      %584 = vperm.xlu0 %583, %v238
      %v585 = vpop.permute.xlu0 %584
      %588 = vset.pattern.permute.xlu0 0
      %589 = vperm.xlu0 %588, %v239
      %v590 = vpop.permute.xlu0 %589
      %593 = vset.pattern.permute.xlu0 0
      %594 = vperm.xlu0 %593, %v240
      %v595 = vpop.permute.xlu0 %594
      %598 = vset.pattern.permute.xlu0 0
      %599 = vperm.xlu0 %598, %v241
      %v600 = vpop.permute.xlu0 %599
      %v602 = vmul.f32 %v585, %v390
      %v603 = vmul.f32 %v585, %v394
      %v604 = vmul.f32 %v590, %v390
      %v605 = vmul.f32 %v590, %v394
      %v606 = vmul.f32 %v595, %v390
      %v607 = vmul.f32 %v595, %v394
      %v608 = vmul.f32 %v600, %v390
      %v609 = vmul.f32 %v600, %v394
      %v610 = vadd.f32 %v574, %v602
      %v611 = vadd.f32 %v575, %v603
      %v612 = vadd.f32 %v576, %v604
      %v613 = vadd.f32 %v577, %v605
      %v614 = vadd.f32 %v578, %v606
      %v615 = vadd.f32 %v579, %v607
      %v616 = vadd.f32 %v580, %v608
      %v617 = vadd.f32 %v581, %v609
      %618 = vrot.lane.b32.xlu0 %v299, 127
      %v619 = vpop.permute.xlu0 %618
      %620 = vrot.lane.b32.xlu0 %v303, 127
      %v621 = vpop.permute.xlu0 %620
      %622 = vrot.lane.b32.xlu0 0.0, 127
      %v623 = vpop.permute.xlu0 %622
      %vm624 = vcmask 1039360
      %v625 = vsel %vm624, %v619, %v621
      %v626 = vsel %vm624, %v621, %v623
      %v629 = vsel %vm293, %v625, 0.0
      %v630 = vsel %vm294, %v626, 0.0
      %632 = vset.pattern.permute.xlu0 0
      %633 = vperm.xlu0 %632, %v242
      %v634 = vpop.permute.xlu0 %633
      %637 = vset.pattern.permute.xlu0 0
      %638 = vperm.xlu0 %637, %v243
      %v639 = vpop.permute.xlu0 %638
      %642 = vset.pattern.permute.xlu0 0
      %643 = vperm.xlu0 %642, %v244
      %v644 = vpop.permute.xlu0 %643
      %647 = vset.pattern.permute.xlu0 0
      %648 = vperm.xlu0 %647, %v245
      %v649 = vpop.permute.xlu0 %648
      %v651 = vlaneseq
      %v652 = vshrl.u32 %v651, 7
      %v653 = vsub.s32 0, %v652
      %v654 = vrot.slane %v629, %v653
      %v655 = vlaneseq
      %v656 = vshrl.u32 %v655, 7
      %v657 = vsub.s32 0, %v656
      %v658 = vrot.slane %v630, %v657
      %v659 = vmul.f32 %v634, %v654
      %v660 = vmul.f32 %v634, %v658
      %v661 = vmul.f32 %v639, %v654
      %v662 = vmul.f32 %v639, %v658
      %v663 = vmul.f32 %v644, %v654
      %v664 = vmul.f32 %v644, %v658
      %v665 = vmul.f32 %v649, %v654
      %v666 = vmul.f32 %v649, %v658
      %v667 = vadd.f32 %v610, %v659
      %v668 = vadd.f32 %v611, %v660
      %v669 = vadd.f32 %v612, %v661
      %v670 = vadd.f32 %v613, %v662
      %v671 = vadd.f32 %v614, %v663
      %v672 = vadd.f32 %v615, %v664
      %v673 = vadd.f32 %v616, %v665
      %v674 = vadd.f32 %v617, %v666
      %675 = vrot.lane.b32.xlu0 %v299, 113
      %v676 = vpop.permute.xlu0 %675
      %677 = vrot.lane.b32.xlu0 %v303, 113
      %v678 = vpop.permute.xlu0 %677
      %679 = vrot.lane.b32.xlu0 0.0, 113
      %v680 = vpop.permute.xlu0 %679
      %vm681 = vcmask 924672
      %v682 = vsel %vm681, %v676, %v678
      %v683 = vsel %vm681, %v678, %v680
      %v686 = vsel %vm291, %v682, 0.0
      %v687 = vsel %vm292, %v683, 0.0
      %689 = vset.pattern.permute.xlu0 0
      %690 = vperm.xlu0 %689, %v246
      %v691 = vpop.permute.xlu0 %690
      %694 = vset.pattern.permute.xlu0 0
      %695 = vperm.xlu0 %694, %v247
      %v696 = vpop.permute.xlu0 %695
      %699 = vset.pattern.permute.xlu0 0
      %700 = vperm.xlu0 %699, %v248
      %v701 = vpop.permute.xlu0 %700
      %704 = vset.pattern.permute.xlu0 0
      %705 = vperm.xlu0 %704, %v249
      %v706 = vpop.permute.xlu0 %705
      %v708 = vlaneseq
      %v709 = vshrl.u32 %v708, 7
      %v710 = vsub.s32 0, %v709
      %v711 = vrot.slane %v686, %v710
      %v712 = vlaneseq
      %v713 = vshrl.u32 %v712, 7
      %v714 = vsub.s32 0, %v713
      %v715 = vrot.slane %v687, %v714
      %v716 = vmul.f32 %v691, %v711
      %v717 = vmul.f32 %v691, %v715
      %v718 = vmul.f32 %v696, %v711
      %v719 = vmul.f32 %v696, %v715
      %v720 = vmul.f32 %v701, %v711
      %v721 = vmul.f32 %v701, %v715
      %v722 = vmul.f32 %v706, %v711
      %v723 = vmul.f32 %v706, %v715
      %v724 = vadd.f32 %v667, %v716
      %v725 = vadd.f32 %v668, %v717
      %v726 = vadd.f32 %v669, %v718
      %v727 = vadd.f32 %v670, %v719
      %v728 = vadd.f32 %v671, %v720
      %v729 = vadd.f32 %v672, %v721
      %v730 = vadd.f32 %v673, %v722
      %v731 = vadd.f32 %v674, %v723
      %733 = vset.pattern.permute.xlu0 0
      %734 = vperm.xlu0 %733, %v250
      %v735 = vpop.permute.xlu0 %734
      %738 = vset.pattern.permute.xlu0 0
      %739 = vperm.xlu0 %738, %v251
      %v740 = vpop.permute.xlu0 %739
      %743 = vset.pattern.permute.xlu0 0
      %744 = vperm.xlu0 %743, %v252
      %v745 = vpop.permute.xlu0 %744
      %748 = vset.pattern.permute.xlu0 0
      %749 = vperm.xlu0 %748, %v253
      %v750 = vpop.permute.xlu0 %749
      %v752 = vmul.f32 %v735, %v390
      %v753 = vmul.f32 %v735, %v394
      %v754 = vmul.f32 %v735, 0.0
      %v755 = vmul.f32 %v740, %v390
      %v756 = vmul.f32 %v740, %v394
      %v757 = vmul.f32 %v740, 0.0
      %v758 = vmul.f32 %v745, %v390
      %v759 = vmul.f32 %v745, %v394
      %v760 = vmul.f32 %v745, 0.0
      %v761 = vmul.f32 %v750, %v390
      %v762 = vmul.f32 %v750, %v394
      %v763 = vmul.f32 %v750, 0.0
      %776 = vrot.lane.b32.xlu0 %v752, 112
      %v777 = vpop.permute.xlu0 %776
      %778 = vrot.lane.b32.xlu0 %v753, 112
      %v779 = vpop.permute.xlu0 %778
      %780 = vrot.lane.b32.xlu0 %v754, 112
      %v781 = vpop.permute.xlu0 %780
      %782 = vrot.lane.b32.xlu0 %v755, 112
      %v783 = vpop.permute.xlu0 %782
      %784 = vrot.lane.b32.xlu0 %v756, 112
      %v785 = vpop.permute.xlu0 %784
      %786 = vrot.lane.b32.xlu0 %v757, 112
      %v787 = vpop.permute.xlu0 %786
      %788 = vrot.lane.b32.xlu0 %v758, 112
      %v789 = vpop.permute.xlu0 %788
      %790 = vrot.lane.b32.xlu0 %v759, 112
      %v791 = vpop.permute.xlu0 %790
      %792 = vrot.lane.b32.xlu0 %v760, 112
      %v793 = vpop.permute.xlu0 %792
      %794 = vrot.lane.b32.xlu0 %v761, 112
      %v795 = vpop.permute.xlu0 %794
      %796 = vrot.lane.b32.xlu0 %v762, 112
      %v797 = vpop.permute.xlu0 %796
      %798 = vrot.lane.b32.xlu0 %v763, 112
      %v799 = vpop.permute.xlu0 %798
      %vm800 = vcmask 916480
      %v801 = vsel %vm800, %v777, %v779
      %v802 = vsel %vm800, %v779, %v781
      %v803 = vsel %vm800, %v783, %v785
      %v804 = vsel %vm800, %v785, %v787
      %v805 = vsel %vm800, %v789, %v791
      %v806 = vsel %vm800, %v791, %v793
      %v807 = vsel %vm800, %v795, %v797
      %v808 = vsel %vm800, %v797, %v799
      %v817 = vadd.f32 %v724, %v801
      %v818 = vadd.f32 %v725, %v802
      %v819 = vadd.f32 %v726, %v803
      %v820 = vadd.f32 %v727, %v804
      %v821 = vadd.f32 %v728, %v805
      %v822 = vadd.f32 %v729, %v806
      %v823 = vadd.f32 %v730, %v807
      %v824 = vadd.f32 %v731, %v808
      %825 = vrot.lane.b32.xlu0 %v299, 111
      %v826 = vpop.permute.xlu0 %825
      %827 = vrot.lane.b32.xlu0 %v303, 111
      %v828 = vpop.permute.xlu0 %827
      %829 = vrot.lane.b32.xlu0 0.0, 111
      %v830 = vpop.permute.xlu0 %829
      %vm831 = vcmask 908288
      %v832 = vsel %vm831, %v826, %v828
      %v833 = vsel %vm831, %v828, %v830
      %v836 = vsel %vm293, %v832, 0.0
      %v837 = vsel %vm294, %v833, 0.0
      %839 = vset.pattern.permute.xlu0 0
      %840 = vperm.xlu0 %839, %v254
      %v841 = vpop.permute.xlu0 %840
      %844 = vset.pattern.permute.xlu0 0
      %845 = vperm.xlu0 %844, %v255
      %v846 = vpop.permute.xlu0 %845
      %849 = vset.pattern.permute.xlu0 0
      %850 = vperm.xlu0 %849, %v256
      %v851 = vpop.permute.xlu0 %850
      %854 = vset.pattern.permute.xlu0 0
      %855 = vperm.xlu0 %854, %v257
      %v856 = vpop.permute.xlu0 %855
      %v858 = vlaneseq
      %v859 = vshrl.u32 %v858, 7
      %v860 = vsub.s32 0, %v859
      %v861 = vrot.slane %v836, %v860
      %v862 = vlaneseq
      %v863 = vshrl.u32 %v862, 7
      %v864 = vsub.s32 0, %v863
      %v865 = vrot.slane %v837, %v864
      %v866 = vmul.f32 %v841, %v861
      %v867 = vmul.f32 %v841, %v865
      %v868 = vmul.f32 %v846, %v861
      %v869 = vmul.f32 %v846, %v865
      %v870 = vmul.f32 %v851, %v861
      %v871 = vmul.f32 %v851, %v865
      %v872 = vmul.f32 %v856, %v861
      %v873 = vmul.f32 %v856, %v865
      %v874 = vadd.f32 %v817, %v866
      %v875 = vadd.f32 %v818, %v867
      %v876 = vadd.f32 %v819, %v868
      %v877 = vadd.f32 %v820, %v869
      %v878 = vadd.f32 %v821, %v870
      %v879 = vadd.f32 %v822, %v871
      %v880 = vadd.f32 %v823, %v872
      %v881 = vadd.f32 %v824, %v873
      %883 = vset.pattern.permute.xlu0 0
      %884 = vperm.xlu0 %883, %v258
      %v885 = vpop.permute.xlu0 %884
      %888 = vset.pattern.permute.xlu0 0
      %889 = vperm.xlu0 %888, %v259
      %v890 = vpop.permute.xlu0 %889
      %893 = vset.pattern.permute.xlu0 0
      %894 = vperm.xlu0 %893, %v260
      %v895 = vpop.permute.xlu0 %894
      %898 = vset.pattern.permute.xlu0 0
      %899 = vperm.xlu0 %898, %v261
      %v900 = vpop.permute.xlu0 %899
      %v902 = vadd.f32 %v874, %v885
      %v903 = vadd.f32 %v875, %v885
      %v904 = vadd.f32 %v876, %v890
      %v905 = vadd.f32 %v877, %v890
      %v906 = vadd.f32 %v878, %v895
      %v907 = vadd.f32 %v879, %v895
      %v908 = vadd.f32 %v880, %v900
      %v909 = vadd.f32 %v881, %v900
      %v910 = vmax.f32 %v902, 0.0
      %v911 = vmax.f32 %v903, 0.0
      %v912 = vmax.f32 %v904, 0.0
      %v913 = vmax.f32 %v905, 0.0
      %v914 = vmax.f32 %v906, 0.0
      %v915 = vmax.f32 %v907, 0.0
      %v916 = vmax.f32 %v908, 0.0
      %v917 = vmax.f32 %v909, 0.0
      %vm918 = vcmask 261120
      %v920 = vsel %vm918, %v262, 0
      %v923 = vsel %vm918, %v263, 0
      %925 = vmatprep.subr.mxu0 0.0
      %926 = vmatpush1.msra.mxu0 0.0
      %927 = vmatprep.subr.mxu0 0.0
      %928 = vmatpush1.msra.mxu0 0.0
      %929 = vmatprep.subr.mxu0 0.0
      %930 = vmatpush1.msra.mxu0 0.0
      %931 = vmatprep.subr.mxu0 0.0
      %932 = vmatpush1.msra.mxu0 0.0
      %933 = vmatprep.subr.mxu0 0.0
      %934 = vmatpush1.msra.mxu0 0.0
      %935 = vmatprep.subr.mxu0 0.0
      %936 = vmatpush1.msra.mxu0 0.0
      %937 = vmatprep.subr.mxu0 0.0
      %938 = vmatpush1.msra.mxu0 0.0
      %939 = vmatprep.subr.mxu0 0.0
      %940 = vmatpush1.msra.mxu0 0.0
      %941 = vmatprep.subr.mxu0 0.0
      %942 = vmatpush1.msra.mxu0 0.0
      %943 = vmatprep.subr.mxu0 0.0
      %944 = vmatpush1.msra.mxu0 0.0
      %945 = vmatprep.subr.mxu0 0.0
      %946 = vmatpush1.msra.mxu0 0.0
      %947 = vmatprep.subr.mxu0 0.0
      %948 = vmatpush1.msra.mxu0 0.0
      %949 = vmatprep.subr.mxu0 %v917
      %950 = vmatpush1.msra.mxu0 %v916
      %951 = vmatprep.subr.mxu0 %v915
      %952 = vmatpush1.msra.mxu0 %v914
      %953 = vmatprep.subr.mxu0 %v913
      %954 = vmatpush1.msra.mxu0 %v912
      %955 = vmatprep.subr.mxu0 %v911
      %956 = vmatpush1.msra.mxu0 %v910
      %957 = vmatprep.subr.mxu0 0.0
      %958 = vmatpush2.msra.mxu0 0.0
      %959 = vmatprep.subr.mxu0 0.0
      %960 = vmatpush2.msra.mxu0 0.0
      %961 = vmatprep.subr.mxu0 0.0
      %962 = vmatpush2.msra.mxu0 0.0
      %963 = vmatprep.subr.mxu0 0.0
      %964 = vmatpush2.msra.mxu0 0.0
      %965 = vmatprep.subr.mxu0 0.0
      %966 = vmatpush2.msra.mxu0 0.0
      %967 = vmatprep.subr.mxu0 0.0
      %968 = vmatpush2.msra.mxu0 0.0
      %969 = vmatprep.subr.mxu0 0.0
      %970 = vmatpush2.msra.mxu0 0.0
      %971 = vmatprep.subr.mxu0 0.0
      %972 = vmatpush2.msra.mxu0 0.0
      %973 = vmatprep.subr.mxu0 0.0
      %974 = vmatpush2.msra.mxu0 0.0
      %975 = vmatprep.subr.mxu0 0.0
      %976 = vmatpush2.msra.mxu0 0.0
      %977 = vmatprep.subr.mxu0 0.0
      %978 = vmatpush2.msra.mxu0 0.0
      %979 = vmatprep.subr.mxu0 0.0
      %980 = vmatpush2.msra.mxu0 0.0
      %981 = vmatprep.subr.mxu0 0.0
      %982 = vmatpush2.msra.mxu0 0.0
      %983 = vmatprep.subr.mxu0 0.0
      %984 = vmatpush2.msra.mxu0 0.0
      %985 = vmatprep.subr.mxu0 0.0
      %986 = vmatpush2.msra.mxu0 0.0
      %987 = vmatprep.subr.mxu0 0.0
      %988 = vmatpush2.msra.mxu0 0.0
      %989 = vmatprep.mubr.f32.mxu0 0.0
      %990 = vmatmul.mubr.f32.gmra.mxu0 %v920
      %v991 = vpop.f32.mrf.mxu0
      %v992 = vadd.f32 0.0, %v991
      %v993 = vpop.f32.mrf.mxu0
      %v994 = vadd.f32 0.0, %v993
      %995 = vmatprep.mubr.f32.mxu0 0.0
      %996 = vmatmul.mubr.f32.gmra.mxu0 %v923
      %v997 = vpop.f32.mrf.mxu0
      %v998 = vadd.f32 0.0, %v997
      %v999 = vpop.f32.mrf.mxu0
      %v1000 = vadd.f32 0.0, %v999
      %1001 = vdwg.mxu0
      %1004 = vrot.lane.b32.xlu0 %v992, 17
      %v1005 = vpop.permute.xlu0 %1004
      %1006 = vrot.lane.b32.xlu0 %v994, 17
      %v1007 = vpop.permute.xlu0 %1006
      %v1008 = vsel %vm313, %v308, %v1005
      %v1009 = vsel %vm313, %v1005, %v1007
      %v1012 = vsel %vm291, %v1008, 0.0
      %v1013 = vsel %vm292, %v1009, 0.0
      %v1014 = vadd.f32 %v1012, 0.0
      %v1015 = vadd.f32 %v1013, 0.0
      %v1016 = vrot.slane 0.0, 1
      %v1017 = vrot.slane %v992, 1
      %v1018 = vrot.slane %v994, 1
      %1019 = vrot.lane.b32.xlu0 %v1016, 16
      %v1020 = vpop.permute.xlu0 %1019
      %1021 = vrot.lane.b32.xlu0 %v1017, 16
      %v1022 = vpop.permute.xlu0 %1021
      %1023 = vrot.lane.b32.xlu0 %v1018, 16
      %v1024 = vpop.permute.xlu0 %1023
      %v1025 = vsel %vm443, %v1020, %v1022
      %v1026 = vsel %vm443, %v1022, %v1024
      %v1029 = vadd.f32 %v1014, %v1025
      %v1030 = vadd.f32 %v1015, %v1026
      %v1031 = vrot.slane 0.0, 2
      %v1032 = vrot.slane %v992, 2
      %v1033 = vrot.slane %v994, 2
      %1034 = vrot.lane.b32.xlu0 %v1031, 15
      %v1035 = vpop.permute.xlu0 %1034
      %1036 = vrot.lane.b32.xlu0 %v1032, 15
      %v1037 = vpop.permute.xlu0 %1036
      %1038 = vrot.lane.b32.xlu0 %v1033, 15
      %v1039 = vpop.permute.xlu0 %1038
      %v1040 = vsel %vm474, %v1035, %v1037
      %v1041 = vsel %vm474, %v1037, %v1039
      %v1044 = vsel %vm293, %v1040, 0.0
      %v1045 = vsel %vm294, %v1041, 0.0
      %v1046 = vadd.f32 %v1029, %v1044
      %v1047 = vadd.f32 %v1030, %v1045
      %v1048 = vrot.slane 0.0, 3
      %v1049 = vrot.slane %v992, 3
      %v1050 = vrot.slane %v994, 3
      %1051 = vrot.lane.b32.xlu0 %v1048, 1
      %v1052 = vpop.permute.xlu0 %1051
      %1053 = vrot.lane.b32.xlu0 %v1049, 1
      %v1054 = vpop.permute.xlu0 %1053
      %1055 = vrot.lane.b32.xlu0 %v1050, 1
      %v1056 = vpop.permute.xlu0 %1055
      %v1057 = vsel %vm531, %v1052, %v1054
      %v1058 = vsel %vm531, %v1054, %v1056
      %v1061 = vsel %vm291, %v1057, 0.0
      %v1062 = vsel %vm292, %v1058, 0.0
      %v1063 = vadd.f32 %v1046, %v1061
      %v1064 = vadd.f32 %v1047, %v1062
      %v1065 = vrot.slane %v992, 4
      %v1066 = vrot.slane %v994, 4
      %v1069 = vadd.f32 %v1063, %v1065
      %v1070 = vadd.f32 %v1064, %v1066
      %v1071 = vrot.slane %v992, 5
      %v1072 = vrot.slane %v994, 5
      %v1073 = vrot.slane 0.0, 5
      %1074 = vrot.lane.b32.xlu0 %v1071, 127
      %v1075 = vpop.permute.xlu0 %1074
      %1076 = vrot.lane.b32.xlu0 %v1072, 127
      %v1077 = vpop.permute.xlu0 %1076
      %1078 = vrot.lane.b32.xlu0 %v1073, 127
      %v1079 = vpop.permute.xlu0 %1078
      %v1080 = vsel %vm624, %v1075, %v1077
      %v1081 = vsel %vm624, %v1077, %v1079
      %v1084 = vsel %vm293, %v1080, 0.0
      %v1085 = vsel %vm294, %v1081, 0.0
      %v1086 = vadd.f32 %v1069, %v1084
      %v1087 = vadd.f32 %v1070, %v1085
      %v1088 = vrot.slane %v992, 6
      %v1089 = vrot.slane %v994, 6
      %v1090 = vrot.slane 0.0, 6
      %1091 = vrot.lane.b32.xlu0 %v1088, 113
      %v1092 = vpop.permute.xlu0 %1091
      %1093 = vrot.lane.b32.xlu0 %v1089, 113
      %v1094 = vpop.permute.xlu0 %1093
      %1095 = vrot.lane.b32.xlu0 %v1090, 113
      %v1096 = vpop.permute.xlu0 %1095
      %v1097 = vsel %vm681, %v1092, %v1094
      %v1098 = vsel %vm681, %v1094, %v1096
      %v1101 = vsel %vm291, %v1097, 0.0
      %v1102 = vsel %vm292, %v1098, 0.0
      %v1103 = vadd.f32 %v1086, %v1101
      %v1104 = vadd.f32 %v1087, %v1102
      %v1105 = vrot.slane %v992, 7
      %v1106 = vrot.slane %v994, 7
      %v1107 = vrot.slane 0.0, 7
      %1108 = vrot.lane.b32.xlu0 %v1105, 112
      %v1109 = vpop.permute.xlu0 %1108
      %1110 = vrot.lane.b32.xlu0 %v1106, 112
      %v1111 = vpop.permute.xlu0 %1110
      %1112 = vrot.lane.b32.xlu0 %v1107, 112
      %v1113 = vpop.permute.xlu0 %1112
      %v1114 = vsel %vm800, %v1109, %v1111
      %v1115 = vsel %vm800, %v1111, %v1113
      %v1118 = vadd.f32 %v1103, %v1114
      %v1119 = vadd.f32 %v1104, %v1115
      %1122 = vrot.lane.b32.xlu0 %v998, 111
      %v1123 = vpop.permute.xlu0 %1122
      %1124 = vrot.lane.b32.xlu0 %v1000, 111
      %v1125 = vpop.permute.xlu0 %1124
      %v1126 = vsel %vm831, %v1123, %v1125
      %v1127 = vsel %vm831, %v1125, %v830
      %v1130 = vsel %vm293, %v1126, 0.0
      %v1131 = vsel %vm294, %v1127, 0.0
      %v1132 = vadd.f32 %v1118, %v1130
      %v1133 = vadd.f32 %v1119, %v1131
      %s1134 = sld [smem:[#allocation2]]
      %v1135 = vstv %s1134
      %v1136 = vadd.f32 %v1132, %v1135
      %v1137 = vadd.f32 %v1133, %v1135
      %v1138 = vadd.f32 %v1136, %v299
      %v1139 = vadd.f32 %v1137, %v303
      %v1142 = vcombine.low %v1138, %v1139
      %v1144 = vunpack.c.l.s4 1966171168
      %v1145 = vunpack.c.0.s8 %v1144
      %v1146 = vlaneseq
      %v1147 = vshrl.u32 %v1146, 7
      %v1148 = vsub.s32 %v1145, %v1147
      %v1149 = vrot.slane %v1142, %v1148
      %v1151 = vunpack.c.l.s4 1966171168
      %v1152 = vunpack.c.0.s8 %v1151
      %v1153 = vlaneseq
      %v1154 = vshrl.u32 %v1153, 7
      %v1155 = vsub.s32 %v1152, %v1154
      %v1156 = vrot.slane %v1149, %v1155
      %v1158 = vlaneseq
      %vm1159 = vcmp.ge.s32.totalorder %v1158, 0
      %vm1160 = vcmp.lt.s32.totalorder %v1158, 256
      %vm1161 = vmand %vm1159, %vm1160
      %1162 = vst.msk [vmem:[%s220] sm:$0x3] %vm1161, %v1156
      %p1163 = scmp.lt.s32.totalorder %s17, 7
      %s1164 = scalar_select %p1163, %s17, 7
      %s1165 = smul.addr %s1164, 2
      %s1166 = scalar_lea.vmem %s5, %s1165
      // Predicated region
      $region41: #{_predict_step_batched.1} parent=39 // pred_check
        %p1167 = pneg %p145
      $region42: #{_predict_step_batched.1} parent=39 // pred_check_branch
        %1169 = sbr.rel (%p1167) target = $region44
      $region43: #{_predict_step_batched.1} parent=39 // pred_region
        _
      $region44: #{_predict_step_batched.1} parent=39 // pred_fallthru
        _
    $region40: #{_predict_step_batched.1} parent=5 // pred_fallthru
      _
    %p1170 = scmp.le.s32.totalorder 2, %s12
    // Predicated region
    $region45: #{_predict_step_batched.1} parent=5 // pred_check
      %p1171 = pneg %p1170
    $region46: #{_predict_step_batched.1} parent=5 // pred_check_branch
      %1173 = sbr.rel (%p1171) target = $region48
    $region47: #{_predict_step_batched.1} parent=5 // pred_region
      %s1174 = ssub.s32 %s12, 2
      // Predicated region
      $region49: #{_predict_step_batched.1} parent=47 // pred_check
        %p1175 = pneg %p151
      $region50: #{_predict_step_batched.1} parent=47 // pred_check_branch
        %1177 = sbr.rel (%p1175) target = $region52
      $region51: #{_predict_step_batched.1} parent=47 // pred_region
        %p1178 = scmp.lt.s32.totalorder %s18, 7
        %s1179 = scalar_select %p1178, %s18, 7
        %s1180 = smul.addr %s1179, 2
        %s1181 = scalar_lea.vmem %s5, %s1180
      $region52: #{_predict_step_batched.1} parent=47 // pred_fallthru
        _
    $region48: #{_predict_step_batched.1} parent=5 // pred_fallthru
      _
  $region6: #{_predict_step_batched.1} parent=0 // loop_footer
    %s16 = sadd.s32 1, %s12
  $region7: #{_predict_step_batched.1} parent=0 // loop_footer_branch
    %11 = sbr.rel target = $region3
  $region8: #{_predict_step_batched.1} parent=0 // loop_exit
    _

</llo_original>
